<compile_context>
chip_gen: v6e
topology: v6e:2x2x1
jax: 0.10.0
libtpu: 0.0.40
codegen_flags: <defaults>
</compile_context>

<pallas_src>
import jax
import jax.numpy as jnp
from jax.experimental import pallas as pl
from jax.experimental.pallas import tpu as pltpu

NUM_OPS = 4  # ['none', 'skip_connect', 'conv_1x1', 'gcn_res']
OP_NONE, OP_SKIP, OP_CONV, OP_GCN = 0, 1, 2, 3


def _round_up(v, m):
    return (v + m - 1) // m * m


def _make_mixed_kernel(B, cp, terms, with_weights):
    """Build a trace-time-specialized kernel body.

    Grid = (node-row tile,).  Ref order (only the ones present):
      [weights SMEM] [x rows] [W1] [x0 rows] [adj rows] [XW2 packed] out
    Block shapes:
      x / x0 / out : (B, TN, Cp) f32
      adj          : (TN, Np)   bf16 (shared across the batch)
      W1           : (Cp, Cp)   bf16 (resident)
      XW2 packed   : (Np, B*Cp) bf16 (resident; batch packed on lanes)
    """
    use_skip = 'skip' in terms
    use_conv = 'conv' in terms
    use_gcn = 'gcn' in terms

    def kernel(*refs):
        i = 0
        w_ref = None
        if with_weights:
            w_ref = refs[i]; i += 1
        if use_skip or use_conv:
            x_ref = refs[i]; i += 1
        if use_conv:
            w1_ref = refs[i]; i += 1
        if use_gcn:
            x0_ref = refs[i]; i += 1
            adj_ref = refs[i]; i += 1
            xw2_ref = refs[i]; i += 1
        o_ref = refs[i]

        if use_gcn:
            # One wide MXU pass per row tile serves every batch element:
            # (TN, Np) @ (Np, B*Cp) -> (TN, B*Cp), f32 accumulation.
            agg = jnp.dot(adj_ref[...], xw2_ref[...],
                          preferred_element_type=jnp.float32)

        # B is small and static -> unrolled Python loop; one store per batch.
        for b in range(B):
            acc = None
            if use_skip:
                t = x_ref[b]
                if with_weights:
                    t = w_ref[OP_SKIP] * t
                acc = t
            if use_conv:
                h = jnp.dot(x_ref[b].astype(jnp.bfloat16), w1_ref[...],
                            preferred_element_type=jnp.float32)
                if with_weights:
                    h = w_ref[OP_CONV] * h
                acc = h if acc is None else acc + h
            if use_gcn:
                g = agg[:, b * cp:(b + 1) * cp] + x0_ref[b]
                if with_weights:
                    g = w_ref[OP_GCN] * g
                acc = g if acc is None else acc + g
            o_ref[b] = acc.astype(o_ref.dtype)

    return kernel


def mixed_op(x, x0, adj, weights, w1, w2, selected_idx=None, row_tile=512):
    """Pallas MixedOp forward.

    x, x0   : (B, N, C) float32 node features (x and x_0)
    adj     : (N, N) float32 normalized adjacency SHARED across the batch
              (built from edge_index); per-batch adjacency would re-add a
              batch grid axis.
    weights : (NUM_OPS,) float32 mixture weights (used only when
              selected_idx is None)
    selected_idx : optional Python int -> ops[selected_idx](x, x_0, edge_index)
    """
    B, N, C = x.shape
    assert adj.ndim == 2 and adj.shape == (N, N), "adj must be shared (N, N)"

    # ---- trace-time specialization -------------------------------------
    if selected_idx is not None:
        selected_idx = int(selected_idx)
        if selected_idx == OP_NONE:
            return jnp.zeros_like(x)          # 'none' -> 0 (no kernel, no DMA)
        if selected_idx == OP_SKIP:
            return x                          # 'skip_connect' -> identity
        terms = ('conv',) if selected_idx == OP_CONV else ('gcn',)
        with_weights = False
    else:
        terms = ('skip', 'conv', 'gcn')       # softmax weights never skip ops
        with_weights = True
    use_skip = 'skip' in terms
    use_conv = 'conv' in terms
    use_gcn = 'gcn' in terms

    # ---- padding / tiling ----------------------------------------------
    cp = _round_up(max(C, 128), 128)          # lane-dense channels
    np_ = _round_up(N, 128)                   # lane-dense adjacency K operand
    if np_ > row_tile:
        tn = row_tile                         # multiple of 128
        np_ = _round_up(np_, tn)
    else:
        tn = np_
    n_tiles = np_ // tn

    f32, bf16 = jnp.float32, jnp.bfloat16
    # Zero padding is exact: padded rows / channels contribute 0 everywhere.
    xp = jnp.zeros((B, np_, cp), f32).at[:, :N, :C].set(x)

    operands, in_specs = [], []
    if with_weights:
        operands.append(weights.astype(f32))
        in_specs.append(pl.BlockSpec(memory_space=pltpu.MemorySpace.SMEM))
    if use_skip or use_conv:
        operands.append(xp)
        in_specs.append(pl.BlockSpec((B, tn, cp), lambda r: (0, r, 0)))
    if use_conv:
        w1p = jnp.zeros((cp, cp), f32).at[:C, :C].set(w1).astype(bf16)
        operands.append(w1p)
        in_specs.append(pl.BlockSpec((cp, cp), lambda r: (0, 0)))
    if use_gcn:
        x0p = jnp.zeros((B, np_, cp), f32).at[:, :N, :C].set(x0)
        adjp = jnp.zeros((np_, np_), f32).at[:N, :N].set(adj).astype(bf16)
        # XW2 precomputed outside the kernel (bf16 MXU inputs, f32 accum),
        # then batch-packed along the lane axis -> resident (Np, B*Cp) RHS.
        w2p = jnp.zeros((cp, cp), f32).at[:C, :C].set(w2).astype(bf16)
        xw2 = jnp.einsum("bnc,cd->bnd", xp.astype(bf16), w2p,
                         preferred_element_type=f32).astype(bf16)
        xw2_packed = jnp.transpose(xw2, (1, 0, 2)).reshape(np_, B * cp)
        operands += [x0p, adjp, xw2_packed]
        in_specs += [
            pl.BlockSpec((B, tn, cp), lambda r: (0, r, 0)),   # x_0 rows
            pl.BlockSpec((tn, np_), lambda r: (r, 0)),        # adj rows
            pl.BlockSpec((np_, B * cp), lambda r: (0, 0)),    # XW2 (resident)
        ]

    kernel = _make_mixed_kernel(B, cp, terms, with_weights)

    out = pl.pallas_call(
        kernel,
        out_shape=jax.ShapeDtypeStruct((B, np_, cp), x.dtype),
        grid=(n_tiles,),
        in_specs=in_specs,
        out_specs=pl.BlockSpec((B, tn, cp), lambda r: (0, r, 0)),
        compiler_params=pltpu.CompilerParams(
            # No cross-step state -> row-tile axis is fully parallel
            # (v7x megacore sharding even at B == 1).
            dimension_semantics=("parallel",),
            vmem_limit_bytes=48 * 1024 * 1024),
    )(*operands)

    return out[:, :N, :C]


# ----------------------------- plain-JAX glue -----------------------------

def build_norm_adj(edge_index, num_nodes, dtype=jnp.float32):
    """edge_index (2, E) int32 -> symmetrically normalized dense adjacency."""
    src, dst = edge_index[0], edge_index[1]
    ones = jnp.ones(src.shape, dtype)
    a = jnp.zeros((num_nodes, num_nodes), dtype)
    a = a.at[dst, src].max(ones)
    a = a.at[src, dst].max(ones)                 # symmetrize
    idx = jnp.arange(num_nodes)
    a = a.at[idx, idx].set(1.0)                  # self loops, exactly once
    deg = a.sum(-1)
    dinv = jax.lax.rsqrt(deg)
    return a * dinv[:, None] * dinv[None, :]


def reference_mixed_op_f32(x, x0, adj, weights, w1, w2):
    """Pure f32 reference (matches the original PyTorch math)."""
    h_conv = jnp.einsum("bnc,cd->bnd", x, w1)
    h_gcn = jnp.einsum("nm,bmc->bnc", adj,
                       jnp.einsum("bnc,cd->bnd", x, w2)) + x0
    return weights[1] * x + weights[2] * h_conv + weights[3] * h_gcn


def reference_mixed_op_bf16(x, x0, adj, weights, w1, w2):
    """Reference mirroring the kernel numerics: bf16 MXU inputs, f32 accum."""
    xb = x.astype(jnp.bfloat16)
    h_conv = jnp.einsum("bnc,cd->bnd", xb, w1.astype(jnp.bfloat16),
                        preferred_element_type=jnp.float32)
    xw2 = jnp.einsum("bnc,cd->bnd", xb, w2.astype(jnp.bfloat16),
                     preferred_element_type=jnp.float32).astype(jnp.bfloat16)
    h_gcn = jnp.einsum("nm,bmc->bnc", adj.astype(jnp.bfloat16), xw2,
                       preferred_element_type=jnp.float32) + x0
    return weights[1] * x + weights[2] * h_conv + weights[3] * h_gcn


if __name__ == "__main__":
    key = jax.random.PRNGKey(0)
    B, C, N, E = 2, 32, 16, 48   # batch, channels, nodes, edges

    kx, kx0, ke1, ke2, kw1, kw2, ka = jax.random.split(key, 7)

    # PyTorch-style NCHW inputs: (B, C, N, 1)
    x_nchw = jax.random.normal(kx, (B, C, N, 1), jnp.float32)
    x0_nchw = jax.random.normal(kx0, (B, C, N, 1), jnp.float32)
    # layout: convert NCHW (B, C, N, 1) -> kernel layout (B, N, C)
    x = jnp.transpose(x_nchw[..., 0], (0, 2, 1))
    x0 = jnp.transpose(x0_nchw[..., 0], (0, 2, 1))

    edge_index = jnp.stack([
        jax.random.randint(ke1, (E,), 0, N, jnp.int32),
        jax.random.randint(ke2, (E,), 0, N, jnp.int32),
    ])
    adj = build_norm_adj(edge_index, N)          # shared (N, N) adjacency

    # Deterministic op parameters (nn.Conv2d(C, C, 1) / GCN linear weights).
    w1 = jax.random.normal(kw1, (C, C), jnp.float32) * (1.0 / jnp.sqrt(C))
    w2 = jax.random.normal(kw2, (C, C), jnp.float32) * (1.0 / jnp.sqrt(C))

    # Architecture weights (softmax over candidate ops, as in DARTS/SGAS).
    alphas = jax.random.normal(ka, (NUM_OPS,), jnp.float32)
    weights = jax.nn.softmax(alphas)

    # ---- mixture path (selected_idx is None) ----
    out = jax.block_until_ready(mixed_op(x, x0, adj, weights, w1, w2))
    ref_b = reference_mixed_op_bf16(x, x0, adj, weights, w1, w2)
    ref_f = reference_mixed_op_f32(x, x0, adj, weights, w1, w2)
    assert jnp.allclose(out, ref_b, atol=2e-3, rtol=2e-3), "mixture mismatch (bf16 ref)"
    assert jnp.allclose(out, ref_f, atol=5e-2, rtol=5e-2), "mixture mismatch (f32 ref)"

    # ---- selected: ops[3] == 'gcn_res' (heavy path; x, W1, weights not DMA'd) ----
    out_gcn = jax.block_until_ready(
        mixed_op(x, x0, adj, weights, w1, w2, selected_idx=3))
    ref_gcn = reference_mixed_op_bf16(
        x, x0, adj, jax.nn.one_hot(3, NUM_OPS, dtype=jnp.float32), w1, w2)
    assert jnp.allclose(out_gcn, ref_gcn, atol=2e-3, rtol=2e-3), "selected(gcn) mismatch"

    # ---- selected: ops[2] == 'conv_1x1' (no adjacency / x_0 traffic at all) ----
    out_conv = jax.block_until_ready(
        mixed_op(x, x0, adj, weights, w1, w2, selected_idx=2))
    ref_conv = jnp.einsum("bnc,cd->bnd", x.astype(jnp.bfloat16),
                          w1.astype(jnp.bfloat16),
                          preferred_element_type=jnp.float32)
    assert jnp.allclose(out_conv, ref_conv, atol=2e-3, rtol=2e-3), "selected(conv) mismatch"

    # ---- selected: ops[1] == 'skip_connect' and ops[0] == 'none' ----
    out_skip = jax.block_until_ready(
        mixed_op(x, x0, adj, weights, w1, w2, selected_idx=1))
    assert jnp.allclose(out_skip, x, atol=1e-6), "selected(skip) mismatch"
    out_none = jax.block_until_ready(
        mixed_op(x, x0, adj, weights, w1, w2, selected_idx=0))
    assert jnp.allclose(out_none, jnp.zeros_like(x), atol=1e-6), "selected(none) mismatch"

    print("KERNEL_OK")
</pallas_src>

<mosaic_0001>
module attributes {stable_mosaic.version = 11 : i64} {
  func.func @kernel(%arg0: i32, %arg1: memref<4xf32, #tpu.memory_space<smem>>, %arg2: memref<2x128x128xf32, #tpu.memory_space<vmem>>, %arg3: memref<128x128xbf16, #tpu.memory_space<vmem>>, %arg4: memref<2x128x128xf32, #tpu.memory_space<vmem>>, %arg5: memref<128x128xbf16, #tpu.memory_space<vmem>>, %arg6: memref<128x256xbf16, #tpu.memory_space<vmem>>, %arg7: memref<2x128x128xf32, #tpu.memory_space<vmem>>) attributes {dimension_semantics = [#tpu.dimension_semantics<parallel>], iteration_bounds = array<i64: 1>, scalar_prefetch = 0 : i64, scratch_operands = 0 : i64, tpu.core_type = #tpu.core_type<tc>, window_params = [{transform_indices = @transform_0, window_bounds = array<i64: 4>}, {transform_indices = @transform_1, window_bounds = array<i64: 2, 128, 128>}, {pipeline_mode = #tpu.pipeline_mode<synchronous>, transform_indices = @transform_2, window_bounds = array<i64: 128, 128>}, {transform_indices = @transform_3, window_bounds = array<i64: 2, 128, 128>}, {transform_indices = @transform_4, window_bounds = array<i64: 128, 128>}, {pipeline_mode = #tpu.pipeline_mode<synchronous>, transform_indices = @transform_5, window_bounds = array<i64: 128, 256>}, {transform_indices = @transform_6, window_bounds = array<i64: 2, 128, 128>}]} {
    %c0 = arith.constant 0 : index
    %c0_0 = arith.constant 0 : index
    %0 = vector.load %arg5[%c0, %c0_0] : memref<128x128xbf16, #tpu.memory_space<vmem>>, vector<128x128xbf16>
    %c0_1 = arith.constant 0 : index
    %c0_2 = arith.constant 0 : index
    %1 = vector.load %arg6[%c0_1, %c0_2] : memref<128x256xbf16, #tpu.memory_space<vmem>>, vector<128x256xbf16>
    %cst = arith.constant dense<0.000000e+00> : vector<128x256xf32>
    %2 = tpu.matmul %0, %1, %cst {dimension_numbers = #tpu.dot_dimension_numbers<[1], [0], [0], [1], [0, 0, 1, 1], [], []>} : vector<128x128xbf16>, vector<128x256xbf16>, vector<128x256xf32> -> vector<128x256xf32>
    %c0_3 = arith.constant 0 : index
    %c0_4 = arith.constant 0 : index
    %c0_5 = arith.constant 0 : index
    %3 = vector.load %arg2[%c0_3, %c0_4, %c0_5] : memref<2x128x128xf32, #tpu.memory_space<vmem>>, vector<1x128x128xf32>
    %4 = vector.shape_cast %3 : vector<1x128x128xf32> to vector<128x128xf32>
    %c1 = arith.constant 1 : index
    %5 = memref.load %arg1[%c1] : memref<4xf32, #tpu.memory_space<smem>>
    %6 = vector.broadcast %5 : f32 to vector<128x128xf32>
    %7 = arith.mulf %6, %4 : vector<128x128xf32>
    %c0_6 = arith.constant 0 : index
    %c0_7 = arith.constant 0 : index
    %c0_8 = arith.constant 0 : index
    %8 = vector.load %arg2[%c0_6, %c0_7, %c0_8] : memref<2x128x128xf32, #tpu.memory_space<vmem>>, vector<1x128x128xf32>
    %9 = vector.shape_cast %8 : vector<1x128x128xf32> to vector<128x128xf32>
    %10 = arith.truncf %9 : vector<128x128xf32> to vector<128x128xbf16>
    %c0_9 = arith.constant 0 : index
    %c0_10 = arith.constant 0 : index
    %11 = vector.load %arg3[%c0_9, %c0_10] : memref<128x128xbf16, #tpu.memory_space<vmem>>, vector<128x128xbf16>
    %cst_11 = arith.constant dense<0.000000e+00> : vector<128x128xf32>
    %12 = tpu.matmul %10, %11, %cst_11 {dimension_numbers = #tpu.dot_dimension_numbers<[1], [0], [0], [1], [0, 0, 1, 1], [], []>} : vector<128x128xbf16>, vector<128x128xbf16>, vector<128x128xf32> -> vector<128x128xf32>
    %c2 = arith.constant 2 : index
    %13 = memref.load %arg1[%c2] : memref<4xf32, #tpu.memory_space<smem>>
    %14 = vector.broadcast %13 : f32 to vector<128x128xf32>
    %15 = arith.mulf %14, %12 : vector<128x128xf32>
    %16 = arith.addf %7, %15 : vector<128x128xf32>
    %17 = vector.extract_strided_slice %2 {offsets = [0, 0], sizes = [128, 128], strides = [1, 1]} : vector<128x256xf32> to vector<128x128xf32>
    %c0_12 = arith.constant 0 : index
    %c0_13 = arith.constant 0 : index
    %c0_14 = arith.constant 0 : index
    %18 = vector.load %arg4[%c0_12, %c0_13, %c0_14] : memref<2x128x128xf32, #tpu.memory_space<vmem>>, vector<1x128x128xf32>
    %19 = vector.shape_cast %18 : vector<1x128x128xf32> to vector<128x128xf32>
    %20 = arith.addf %17, %19 : vector<128x128xf32>
    %c3 = arith.constant 3 : index
    %21 = memref.load %arg1[%c3] : memref<4xf32, #tpu.memory_space<smem>>
    %22 = vector.broadcast %21 : f32 to vector<128x128xf32>
    %23 = arith.mulf %22, %20 : vector<128x128xf32>
    %24 = arith.addf %16, %23 : vector<128x128xf32>
    %c0_15 = arith.constant 0 : index
    %c0_16 = arith.constant 0 : index
    %c0_17 = arith.constant 0 : index
    %25 = vector.load %arg7[%c0_15, %c0_16, %c0_17] : memref<2x128x128xf32, #tpu.memory_space<vmem>>, vector<1x128x128xf32>
    %26 = vector.shape_cast %25 : vector<1x128x128xf32> to vector<128x128xf32>
    %27 = vector.shape_cast %24 : vector<128x128xf32> to vector<1x128x128xf32>
    tpu.vector_store %arg7[%c0_15, %c0_16, %c0_17], %27 {strides = array<i32>} : memref<2x128x128xf32, #tpu.memory_space<vmem>>, vector<1x128x128xf32>,
    %c1_18 = arith.constant 1 : index
    %c0_19 = arith.constant 0 : index
    %c0_20 = arith.constant 0 : index
    %28 = vector.load %arg2[%c1_18, %c0_19, %c0_20] : memref<2x128x128xf32, #tpu.memory_space<vmem>>, vector<1x128x128xf32>
    %29 = vector.shape_cast %28 : vector<1x128x128xf32> to vector<128x128xf32>
    %c1_21 = arith.constant 1 : index
    %30 = memref.load %arg1[%c1_21] : memref<4xf32, #tpu.memory_space<smem>>
    %31 = vector.broadcast %30 : f32 to vector<128x128xf32>
    %32 = arith.mulf %31, %29 : vector<128x128xf32>
    %c1_22 = arith.constant 1 : index
    %c0_23 = arith.constant 0 : index
    %c0_24 = arith.constant 0 : index
    %33 = vector.load %arg2[%c1_22, %c0_23, %c0_24] : memref<2x128x128xf32, #tpu.memory_space<vmem>>, vector<1x128x128xf32>
    %34 = vector.shape_cast %33 : vector<1x128x128xf32> to vector<128x128xf32>
    %35 = arith.truncf %34 : vector<128x128xf32> to vector<128x128xbf16>
    %c0_25 = arith.constant 0 : index
    %c0_26 = arith.constant 0 : index
    %36 = vector.load %arg3[%c0_25, %c0_26] : memref<128x128xbf16, #tpu.memory_space<vmem>>, vector<128x128xbf16>
    %cst_27 = arith.constant dense<0.000000e+00> : vector<128x128xf32>
    %37 = tpu.matmul %35, %36, %cst_27 {dimension_numbers = #tpu.dot_dimension_numbers<[1], [0], [0], [1], [0, 0, 1, 1], [], []>} : vector<128x128xbf16>, vector<128x128xbf16>, vector<128x128xf32> -> vector<128x128xf32>
    %c2_28 = arith.constant 2 : index
    %38 = memref.load %arg1[%c2_28] : memref<4xf32, #tpu.memory_space<smem>>
    %39 = vector.broadcast %38 : f32 to vector<128x128xf32>
    %40 = arith.mulf %39, %37 : vector<128x128xf32>
    %41 = arith.addf %32, %40 : vector<128x128xf32>
    %42 = vector.extract_strided_slice %2 {offsets = [0, 128], sizes = [128, 128], strides = [1, 1]} : vector<128x256xf32> to vector<128x128xf32>
    %c1_29 = arith.constant 1 : index
    %c0_30 = arith.constant 0 : index
    %c0_31 = arith.constant 0 : index
    %43 = vector.load %arg4[%c1_29, %c0_30, %c0_31] : memref<2x128x128xf32, #tpu.memory_space<vmem>>, vector<1x128x128xf32>
    %44 = vector.shape_cast %43 : vector<1x128x128xf32> to vector<128x128xf32>
    %45 = arith.addf %42, %44 : vector<128x128xf32>
    %c3_32 = arith.constant 3 : index
    %46 = memref.load %arg1[%c3_32] : memref<4xf32, #tpu.memory_space<smem>>
    %47 = vector.broadcast %46 : f32 to vector<128x128xf32>
    %48 = arith.mulf %47, %45 : vector<128x128xf32>
    %49 = arith.addf %41, %48 : vector<128x128xf32>
    %c1_33 = arith.constant 1 : index
    %c0_34 = arith.constant 0 : index
    %c0_35 = arith.constant 0 : index
    %50 = vector.load %arg7[%c1_33, %c0_34, %c0_35] : memref<2x128x128xf32, #tpu.memory_space<vmem>>, vector<1x128x128xf32>
    %51 = vector.shape_cast %50 : vector<1x128x128xf32> to vector<128x128xf32>
    %52 = vector.shape_cast %49 : vector<128x128xf32> to vector<1x128x128xf32>
    tpu.vector_store %arg7[%c1_33, %c0_34, %c0_35], %52 {strides = array<i32>} : memref<2x128x128xf32, #tpu.memory_space<vmem>>, vector<1x128x128xf32>,
    return
  }
  func.func @transform_0(%arg0: i32) -> i32 {
    %c0_i32 = arith.constant 0 : i32
    %c0_i32_0 = arith.constant 0 : i32
    return %c0_i32 : i32
  }
  func.func @transform_1(%arg0: i32) -> (i32, i32, i32) {
    %c0_i32 = arith.constant 0 : i32
    %c0_i32_0 = arith.constant 0 : i32
    %c0_i32_1 = arith.constant 0 : i32
    return %c0_i32, %arg0, %c0_i32_0 : i32, i32, i32
  }
  func.func @transform_2(%arg0: i32) -> (i32, i32) {
    %c0_i32 = arith.constant 0 : i32
    %c0_i32_0 = arith.constant 0 : i32
    %c0_i32_1 = arith.constant 0 : i32
    return %c0_i32, %c0_i32_0 : i32, i32
  }
  func.func @transform_3(%arg0: i32) -> (i32, i32, i32) {
    %c0_i32 = arith.constant 0 : i32
    %c0_i32_0 = arith.constant 0 : i32
    %c0_i32_1 = arith.constant 0 : i32
    return %c0_i32, %arg0, %c0_i32_0 : i32, i32, i32
  }
  func.func @transform_4(%arg0: i32) -> (i32, i32) {
    %c0_i32 = arith.constant 0 : i32
    %c0_i32_0 = arith.constant 0 : i32
    return %arg0, %c0_i32 : i32, i32
  }
  func.func @transform_5(%arg0: i32) -> (i32, i32) {
    %c0_i32 = arith.constant 0 : i32
    %c0_i32_0 = arith.constant 0 : i32
    %c0_i32_1 = arith.constant 0 : i32
    return %c0_i32, %c0_i32_0 : i32, i32
  }
  func.func @transform_6(%arg0: i32) -> (i32, i32, i32) {
    %c0_i32 = arith.constant 0 : i32
    %c0_i32_0 = arith.constant 0 : i32
    %c0_i32_1 = arith.constant 0 : i32
    return %c0_i32, %arg0, %c0_i32_0 : i32, i32, i32
  }
}

</mosaic_0001>

<llo_original>
// kernel: tpu_custom_call.1
$region0: #{tpu_custom_call.1}
  #allocation0 [shape = 'u32[]', space=smem, size = 0x4, offset = 0x4, fixed_abs, tag = 'smem constant byte address 0x4 - core index']
  #allocation1 [shape = 'u32[144,128]{1,0:T(1,128)}', space=vmem, size = 0x12000, scoped, tag = 'internal scratch']
  %s0 = inlined_call_operand.hbm [shape: f32[4], index: 0, kind: input, shape index: {}]
  %s1 = inlined_call_operand.hbm [shape: f32[2,128,128], index: 1, kind: input, shape index: {}]
  %s2 = inlined_call_operand.hbm [shape: bf16[128,128], index: 2, kind: input, shape index: {}]
  %s3 = inlined_call_operand.hbm [shape: f32[2,128,128], index: 3, kind: input, shape index: {}]
  %s4 = inlined_call_operand.hbm [shape: bf16[128,128], index: 4, kind: input, shape index: {}]
  %s5 = inlined_call_operand.hbm [shape: bf16[128,256], index: 5, kind: input, shape index: {}]
  %s6 = inlined_call_operand.hbm [shape: f32[2,128,128], index: 6, kind: output, shape index: {}]
  %s7 = sld [smem:[#allocation0]]
  $region58: #{tpu_custom_call.1} parent=0
    _
  %s9 = ssub.s32 1, %s7
  %s10 = scalar_select 0, %s9, %s7
  $region1: #{tpu_custom_call.1} parent=0
    #allocation2 [shape = 'u8[512]{0}', space=smem, size = 0x200, scoped, tag = 'input window, operand 0, single buffered']
    #allocation3 [shape = 's32[1]{0}', space=sflag, size = 0x4, scoped, tag = 'scoped memory for tpu_custom_call.1']
    #allocation4 [shape = 's32[1]{0}', space=sflag, size = 0x4, scoped, tag = 'scoped memory for tpu_custom_call.1']
    #allocation5 [shape = 's32[1]{0}', space=sflag, size = 0x4, scoped, tag = 'scoped memory for tpu_custom_call.1']
    #allocation6 [shape = 'u8[131072]{0}', space=vmem, size = 0x20000, scoped, tag = 'input window, operand 1, single buffered']
    #allocation7 [shape = 'u8[32768]{0}', space=vmem, size = 0x8000, scoped, tag = 'input window, operand 2, single buffered']
    #allocation8 [shape = 's32[1]{0}', space=sflag, size = 0x4, scoped, tag = 'scoped memory for tpu_custom_call.1']
    #allocation9 [shape = 'u8[131072]{0}', space=vmem, size = 0x20000, scoped, tag = 'input window, operand 3, single buffered']
    #allocation10 [shape = 'u8[32768]{0}', space=vmem, size = 0x8000, scoped, tag = 'input window, operand 4, single buffered']
    #allocation11 [shape = 's32[1]{0}', space=sflag, size = 0x4, scoped, tag = 'scoped memory for tpu_custom_call.1']
    #allocation12 [shape = 'u8[65536]{0}', space=vmem, size = 0x10000, scoped, tag = 'input window, operand 5, single buffered']
    #allocation13 [shape = 'u8[131072]{0}', space=vmem, size = 0x20000, scoped, tag = 'output window, operand 0, single buffered']
    %11 = vsyncpa [#allocation5], 0
    %12 = vsyncpa [#allocation3], 0
    %13 = vsyncpa [#allocation8], 0
    %14 = vsyncpa [#allocation11], 0
    %15 = vsyncpa [#allocation4], 0
    // Predicated region
    $region2: #{tpu_custom_call.1} parent=1 // pred_check
      _
    $region3: #{tpu_custom_call.1} parent=1 // pred_check_branch
      %17 = sbr.rel (0) target = $region5
    $region4: #{tpu_custom_call.1} parent=1 // pred_region
      %s19 = ssub.s32 16, 16
      %20 = vsyncadd [#allocation5], %s19
      %23 = dma.hbm_to_smem %s0, 16, [#allocation2], [#allocation5]
    $region5: #{tpu_custom_call.1} parent=1 // pred_fallthru
      _
    // Predicated region
    $region6: #{tpu_custom_call.1} parent=1 // pred_check
      _
    $region7: #{tpu_custom_call.1} parent=1 // pred_check_branch
      %25 = sbr.rel (0) target = $region9
    $region8: #{tpu_custom_call.1} parent=1 // pred_region
      %s27 = ssub.s32 4096, 4096
      %28 = vsyncadd [#allocation3], %s27
      %s29 = sshll.u32 [#allocation6], 4
      %s30 = int_to_ptr.vmem [resolvable:$true] %s29
      %35 = dma.hbm_to_vmem [thread:$0]  %s1, 4096, %s30, [#allocation3], 128, 128, 8
    $region9: #{tpu_custom_call.1} parent=1 // pred_fallthru
      _
    // Predicated region
    $region10: #{tpu_custom_call.1} parent=1 // pred_check
      _
    $region11: #{tpu_custom_call.1} parent=1 // pred_check_branch
      %37 = sbr.rel (0) target = $region13
    $region12: #{tpu_custom_call.1} parent=1 // pred_region
      %s39 = ssub.s32 1024, 1024
      %40 = vsyncadd [#allocation8], %s39
      %s41 = sshll.u32 [#allocation7], 4
      %s42 = int_to_ptr.vmem [resolvable:$true] %s41
      %47 = dma.hbm_to_vmem [thread:$0]  %s2, 1024, %s42, [#allocation8], 64, 64, 4
    $region13: #{tpu_custom_call.1} parent=1 // pred_fallthru
      _
    // Predicated region
    $region14: #{tpu_custom_call.1} parent=1 // pred_check
      _
    $region15: #{tpu_custom_call.1} parent=1 // pred_check_branch
      %49 = sbr.rel (0) target = $region17
    $region16: #{tpu_custom_call.1} parent=1 // pred_region
      %s51 = ssub.s32 4096, 4096
      %52 = vsyncadd [#allocation8], %s51
      %s53 = sshll.u32 [#allocation9], 4
      %s54 = int_to_ptr.vmem [resolvable:$true] %s53
      %59 = dma.hbm_to_vmem [thread:$0]  %s3, 4096, %s54, [#allocation8], 128, 128, 8
    $region17: #{tpu_custom_call.1} parent=1 // pred_fallthru
      _
    // Predicated region
    $region18: #{tpu_custom_call.1} parent=1 // pred_check
      _
    $region19: #{tpu_custom_call.1} parent=1 // pred_check_branch
      %61 = sbr.rel (0) target = $region21
    $region20: #{tpu_custom_call.1} parent=1 // pred_region
      %s63 = ssub.s32 1024, 1024
      %64 = vsyncadd [#allocation11], %s63
      %s65 = sshll.u32 [#allocation10], 4
      %s66 = int_to_ptr.vmem [resolvable:$true] %s65
      %71 = dma.hbm_to_vmem [thread:$0]  %s4, 1024, %s66, [#allocation11], 64, 64, 4
    $region21: #{tpu_custom_call.1} parent=1 // pred_fallthru
      _
    // Predicated region
    $region22: #{tpu_custom_call.1} parent=1 // pred_check
      _
    $region23: #{tpu_custom_call.1} parent=1 // pred_check_branch
      %73 = sbr.rel (0) target = $region25
    $region24: #{tpu_custom_call.1} parent=1 // pred_region
      %s75 = ssub.s32 2048, 2048
      %76 = vsyncadd [#allocation11], %s75
      %s77 = sshll.u32 [#allocation12], 4
      %s78 = int_to_ptr.vmem [resolvable:$true] %s77
      %83 = dma.hbm_to_vmem [thread:$0]  %s5, 2048, %s78, [#allocation11], 128, 128, 8
    $region25: #{tpu_custom_call.1} parent=1 // pred_fallthru
      _
    // Predicated region
    $region26: #{tpu_custom_call.1} parent=1 // pred_check
      _
    $region27: #{tpu_custom_call.1} parent=1 // pred_check_branch
      %85 = sbr.rel (0) target = $region29
    $region28: #{tpu_custom_call.1} parent=1 // pred_region
      %86 = dma.done [#allocation5], 16
    $region29: #{tpu_custom_call.1} parent=1 // pred_fallthru
      _
    // Predicated region
    $region30: #{tpu_custom_call.1} parent=1 // pred_check
      _
    $region31: #{tpu_custom_call.1} parent=1 // pred_check_branch
      %88 = sbr.rel (0) target = $region33
    $region32: #{tpu_custom_call.1} parent=1 // pred_region
      %89 = dma.done [#allocation3], 4096
    $region33: #{tpu_custom_call.1} parent=1 // pred_fallthru
      _
    // Predicated region
    $region34: #{tpu_custom_call.1} parent=1 // pred_check
      _
    $region35: #{tpu_custom_call.1} parent=1 // pred_check_branch
      %91 = sbr.rel (0) target = $region37
    $region36: #{tpu_custom_call.1} parent=1 // pred_region
      %92 = dma.done [#allocation8], 1024
    $region37: #{tpu_custom_call.1} parent=1 // pred_fallthru
      _
    // Predicated region
    $region38: #{tpu_custom_call.1} parent=1 // pred_check
      _
    $region39: #{tpu_custom_call.1} parent=1 // pred_check_branch
      %94 = sbr.rel (0) target = $region41
    $region40: #{tpu_custom_call.1} parent=1 // pred_region
      %95 = dma.done [#allocation8], 4096
    $region41: #{tpu_custom_call.1} parent=1 // pred_fallthru
      _
    // Predicated region
    $region42: #{tpu_custom_call.1} parent=1 // pred_check
      _
    $region43: #{tpu_custom_call.1} parent=1 // pred_check_branch
      %97 = sbr.rel (0) target = $region45
    $region44: #{tpu_custom_call.1} parent=1 // pred_region
      %98 = dma.done [#allocation11], 1024
    $region45: #{tpu_custom_call.1} parent=1 // pred_fallthru
      _
    // Predicated region
    $region46: #{tpu_custom_call.1} parent=1 // pred_check
      _
    $region47: #{tpu_custom_call.1} parent=1 // pred_check_branch
      %100 = sbr.rel (0) target = $region49
    $region48: #{tpu_custom_call.1} parent=1 // pred_region
      %101 = dma.done [#allocation11], 2048
    $region49: #{tpu_custom_call.1} parent=1 // pred_fallthru
      _
    %102 = sfence
    %v104 = vld [vmem:[#allocation10] sm:$0xf]
    %v105 = vld [vmem:[#allocation10 + $0x4] sm:$0xf]
    %v106 = vld [vmem:[#allocation10 + $0x8] sm:$0xf]
    %v107 = vld [vmem:[#allocation10 + $0xc] sm:$0xf]
    %v108 = vld [vmem:[#allocation10 + $0x10] sm:$0xf]
    %v109 = vld [vmem:[#allocation10 + $0x14] sm:$0xf]
    %v110 = vld [vmem:[#allocation10 + $0x18] sm:$0xf]
    %v111 = vld [vmem:[#allocation10 + $0x1c] sm:$0xf]
    %v112 = vld [vmem:[#allocation10 + $0x20] sm:$0xf]
    %v113 = vld [vmem:[#allocation10 + $0x24] sm:$0xf]
    %v114 = vld [vmem:[#allocation10 + $0x28] sm:$0xf]
    %v115 = vld [vmem:[#allocation10 + $0x2c] sm:$0xf]
    %v116 = vld [vmem:[#allocation10 + $0x30] sm:$0xf]
    %v117 = vld [vmem:[#allocation10 + $0x34] sm:$0xf]
    %v118 = vld [vmem:[#allocation10 + $0x38] sm:$0xf]
    %v119 = vld [vmem:[#allocation10 + $0x3c] sm:$0xf]
    %v120 = vld [vmem:[#allocation12] sm:$0xff]
    %v121 = vld [vmem:[#allocation12 + $0x8] sm:$0xff]
    %v122 = vld [vmem:[#allocation12 + $0x10] sm:$0xff]
    %v123 = vld [vmem:[#allocation12 + $0x18] sm:$0xff]
    %v124 = vld [vmem:[#allocation12 + $0x20] sm:$0xff]
    %v125 = vld [vmem:[#allocation12 + $0x28] sm:$0xff]
    %v126 = vld [vmem:[#allocation12 + $0x30] sm:$0xff]
    %v127 = vld [vmem:[#allocation12 + $0x38] sm:$0xff]
    %v128 = vld [vmem:[#allocation12 + $0x40] sm:$0xff]
    %v129 = vld [vmem:[#allocation12 + $0x48] sm:$0xff]
    %v130 = vld [vmem:[#allocation12 + $0x50] sm:$0xff]
    %v131 = vld [vmem:[#allocation12 + $0x58] sm:$0xff]
    %v132 = vld [vmem:[#allocation12 + $0x60] sm:$0xff]
    %v133 = vld [vmem:[#allocation12 + $0x68] sm:$0xff]
    %v134 = vld [vmem:[#allocation12 + $0x70] sm:$0xff]
    %v135 = vld [vmem:[#allocation12 + $0x78] sm:$0xff]
    %v152 = vunpack.c.l.b16 %v104
    %v153 = vunpack.c.l.b16 %v105
    %v154 = vunpack.c.l.b16 %v106
    %v155 = vunpack.c.l.b16 %v107
    %v156 = vunpack.c.l.b16 %v108
    %v157 = vunpack.c.l.b16 %v109
    %v158 = vunpack.c.l.b16 %v110
    %v159 = vunpack.c.l.b16 %v111
    %v160 = vunpack.c.l.b16 %v112
    %v161 = vunpack.c.l.b16 %v113
    %v162 = vunpack.c.l.b16 %v114
    %v163 = vunpack.c.l.b16 %v115
    %v164 = vunpack.c.l.b16 %v116
    %v165 = vunpack.c.l.b16 %v117
    %v166 = vunpack.c.l.b16 %v118
    %v167 = vunpack.c.l.b16 %v119
    %v168 = vpack.c.b16 %v153, %v152
    %v169 = vpack.c.b16 %v155, %v154
    %v170 = vpack.c.b16 %v157, %v156
    %v171 = vpack.c.b16 %v159, %v158
    %v172 = vpack.c.b16 %v161, %v160
    %v173 = vpack.c.b16 %v163, %v162
    %v174 = vpack.c.b16 %v165, %v164
    %v175 = vpack.c.b16 %v167, %v166
    %v200 = vunpack.c.l.b16 %v120
    %v201 = vunpack.c.h.b16 %v120
    %v202 = vunpack.c.l.b16 %v121
    %v203 = vunpack.c.h.b16 %v121
    %v204 = vunpack.c.l.b16 %v122
    %v205 = vunpack.c.h.b16 %v122
    %v206 = vunpack.c.l.b16 %v123
    %v207 = vunpack.c.h.b16 %v123
    %v208 = vunpack.c.l.b16 %v124
    %v209 = vunpack.c.h.b16 %v124
    %v210 = vunpack.c.l.b16 %v125
    %v211 = vunpack.c.h.b16 %v125
    %v212 = vunpack.c.l.b16 %v126
    %v213 = vunpack.c.h.b16 %v126
    %v214 = vunpack.c.l.b16 %v127
    %v215 = vunpack.c.h.b16 %v127
    %v216 = vunpack.c.l.b16 %v128
    %v217 = vunpack.c.h.b16 %v128
    %v218 = vunpack.c.l.b16 %v129
    %v219 = vunpack.c.h.b16 %v129
    %v220 = vunpack.c.l.b16 %v130
    %v221 = vunpack.c.h.b16 %v130
    %v222 = vunpack.c.l.b16 %v131
    %v223 = vunpack.c.h.b16 %v131
    %v224 = vunpack.c.l.b16 %v132
    %v225 = vunpack.c.h.b16 %v132
    %v226 = vunpack.c.l.b16 %v133
    %v227 = vunpack.c.h.b16 %v133
    %v228 = vunpack.c.l.b16 %v134
    %v229 = vunpack.c.h.b16 %v134
    %v230 = vunpack.c.l.b16 %v135
    %v231 = vunpack.c.h.b16 %v135
    %v232 = vpack.c.b16 %v202, %v200
    %v233 = vpack.c.b16 %v203, %v201
    %v234 = vpack.c.b16 %v206, %v204
    %v235 = vpack.c.b16 %v207, %v205
    %v236 = vpack.c.b16 %v210, %v208
    %v237 = vpack.c.b16 %v211, %v209
    %v238 = vpack.c.b16 %v214, %v212
    %v239 = vpack.c.b16 %v215, %v213
    %v240 = vpack.c.b16 %v218, %v216
    %v241 = vpack.c.b16 %v219, %v217
    %v242 = vpack.c.b16 %v222, %v220
    %v243 = vpack.c.b16 %v223, %v221
    %v244 = vpack.c.b16 %v226, %v224
    %v245 = vpack.c.b16 %v227, %v225
    %v246 = vpack.c.b16 %v230, %v228
    %v247 = vpack.c.b16 %v231, %v229
    %264 = vmatprep.subr.bf16.mxu0 %v247
    %265 = vmatpush1.bf16.msra.mxu0 %v246
    %266 = vmatprep.subr.bf16.mxu0 %v245
    %267 = vmatpush1.bf16.msra.mxu0 %v244
    %268 = vmatprep.subr.bf16.mxu0 %v243
    %269 = vmatpush1.bf16.msra.mxu0 %v242
    %270 = vmatprep.subr.bf16.mxu0 %v241
    %271 = vmatpush1.bf16.msra.mxu0 %v240
    %272 = vmatprep.subr.bf16.mxu0 %v239
    %273 = vmatpush1.bf16.msra.mxu0 %v238
    %274 = vmatprep.subr.bf16.mxu0 %v237
    %275 = vmatpush1.bf16.msra.mxu0 %v236
    %276 = vmatprep.subr.bf16.mxu0 %v235
    %277 = vmatpush1.bf16.msra.mxu0 %v234
    %278 = vmatprep.subr.bf16.mxu0 %v233
    %279 = vmatpush1.bf16.msra.mxu0 %v232
    %280 = vmatprep.subr.bf16.mxu0 0
    %281 = vmatpush2.bf16.msra.mxu0 0
    %282 = vmatprep.subr.bf16.mxu0 0
    %283 = vmatpush2.bf16.msra.mxu0 0
    %284 = vmatprep.subr.bf16.mxu0 0
    %285 = vmatpush2.bf16.msra.mxu0 0
    %286 = vmatprep.subr.bf16.mxu0 0
    %287 = vmatpush2.bf16.msra.mxu0 0
    %288 = vmatprep.subr.bf16.mxu0 0
    %289 = vmatpush2.bf16.msra.mxu0 0
    %290 = vmatprep.subr.bf16.mxu0 0
    %291 = vmatpush2.bf16.msra.mxu0 0
    %292 = vmatprep.subr.bf16.mxu0 0
    %293 = vmatpush2.bf16.msra.mxu0 0
    %294 = vmatprep.subr.bf16.mxu0 0
    %295 = vmatpush2.bf16.msra.mxu0 0
    %296 = vmatprep.mubr.bf16.mxu0 0
    %297 = vmatmul.mubr.bf16.gmra.mxu0 %v168
    %v298 = vpop.f32.mrf.mxu0
    %v299 = vadd.f32 0.0, %v298
    %v300 = vpop.f32.mrf.mxu0
    %v301 = vadd.f32 0.0, %v300
    %v302 = vpop.f32.mrf.mxu0
    %v303 = vadd.f32 0.0, %v302
    %v304 = vpop.f32.mrf.mxu0
    %v305 = vadd.f32 0.0, %v304
    %306 = vmatprep.mubr.bf16.mxu0 0
    %307 = vmatmul.mubr.bf16.gmra.mxu0 %v169
    %v308 = vpop.f32.mrf.mxu0
    %v309 = vadd.f32 0.0, %v308
    %v310 = vpop.f32.mrf.mxu0
    %v311 = vadd.f32 0.0, %v310
    %v312 = vpop.f32.mrf.mxu0
    %v313 = vadd.f32 0.0, %v312
    %v314 = vpop.f32.mrf.mxu0
    %v315 = vadd.f32 0.0, %v314
    %316 = vmatprep.mubr.bf16.mxu0 0
    %317 = vmatmul.mubr.bf16.gmra.mxu0 %v170
    %v318 = vpop.f32.mrf.mxu0
    %v319 = vadd.f32 0.0, %v318
    %v320 = vpop.f32.mrf.mxu0
    %v321 = vadd.f32 0.0, %v320
    %v322 = vpop.f32.mrf.mxu0
    %v323 = vadd.f32 0.0, %v322
    %v324 = vpop.f32.mrf.mxu0
    %v325 = vadd.f32 0.0, %v324
    %326 = vmatprep.mubr.bf16.mxu0 0
    %327 = vmatmul.mubr.bf16.gmra.mxu0 %v171
    %v328 = vpop.f32.mrf.mxu0
    %v329 = vadd.f32 0.0, %v328
    %v330 = vpop.f32.mrf.mxu0
    %v331 = vadd.f32 0.0, %v330
    %v332 = vpop.f32.mrf.mxu0
    %v333 = vadd.f32 0.0, %v332
    %v334 = vpop.f32.mrf.mxu0
    %v335 = vadd.f32 0.0, %v334
    %336 = vmatprep.mubr.bf16.mxu0 0
    %337 = vmatmul.mubr.bf16.gmra.mxu0 %v172
    %v338 = vpop.f32.mrf.mxu0
    %v339 = vadd.f32 0.0, %v338
    %v340 = vpop.f32.mrf.mxu0
    %v341 = vadd.f32 0.0, %v340
    %v342 = vpop.f32.mrf.mxu0
    %v343 = vadd.f32 0.0, %v342
    %v344 = vpop.f32.mrf.mxu0
    %v345 = vadd.f32 0.0, %v344
    %346 = vmatprep.mubr.bf16.mxu0 0
    %347 = vmatmul.mubr.bf16.gmra.mxu0 %v173
    %v348 = vpop.f32.mrf.mxu0
    %v349 = vadd.f32 0.0, %v348
    %v350 = vpop.f32.mrf.mxu0
    %v351 = vadd.f32 0.0, %v350
    %v352 = vpop.f32.mrf.mxu0
    %v353 = vadd.f32 0.0, %v352
    %v354 = vpop.f32.mrf.mxu0
    %v355 = vadd.f32 0.0, %v354
    %356 = vmatprep.mubr.bf16.mxu0 0
    %357 = vmatmul.mubr.bf16.gmra.mxu0 %v174
    %v358 = vpop.f32.mrf.mxu0
    %v359 = vadd.f32 0.0, %v358
    %v360 = vpop.f32.mrf.mxu0
    %v361 = vadd.f32 0.0, %v360
    %v362 = vpop.f32.mrf.mxu0
    %v363 = vadd.f32 0.0, %v362
    %v364 = vpop.f32.mrf.mxu0
    %v365 = vadd.f32 0.0, %v364
    %366 = vmatprep.mubr.bf16.mxu0 0
    %367 = vmatmul.mubr.bf16.gmra.mxu0 %v175
    %v368 = vpop.f32.mrf.mxu0
    %v369 = vadd.f32 0.0, %v368
    %v370 = vpop.f32.mrf.mxu0
    %v371 = vadd.f32 0.0, %v370
    %v372 = vpop.f32.mrf.mxu0
    %v373 = vadd.f32 0.0, %v372
    %v374 = vpop.f32.mrf.mxu0
    %v375 = vadd.f32 0.0, %v374
    %376 = vdwg.mxu0
    %v377 = vld [vmem:[#allocation6] sm:$0xff]
    %v378 = vld [vmem:[#allocation6 + $0x8] sm:$0xff]
    %v379 = vld [vmem:[#allocation6 + $0x10] sm:$0xff]
    %v380 = vld [vmem:[#allocation6 + $0x18] sm:$0xff]
    %v381 = vld [vmem:[#allocation6 + $0x20] sm:$0xff]
    %v382 = vld [vmem:[#allocation6 + $0x28] sm:$0xff]
    %v383 = vld [vmem:[#allocation6 + $0x30] sm:$0xff]
    %v384 = vld [vmem:[#allocation6 + $0x38] sm:$0xff]
    %v385 = vld [vmem:[#allocation6 + $0x40] sm:$0xff]
    %v386 = vld [vmem:[#allocation6 + $0x48] sm:$0xff]
    %v387 = vld [vmem:[#allocation6 + $0x50] sm:$0xff]
    %v388 = vld [vmem:[#allocation6 + $0x58] sm:$0xff]
    %v389 = vld [vmem:[#allocation6 + $0x60] sm:$0xff]
    %v390 = vld [vmem:[#allocation6 + $0x68] sm:$0xff]
    %v391 = vld [vmem:[#allocation6 + $0x70] sm:$0xff]
    %v392 = vld [vmem:[#allocation6 + $0x78] sm:$0xff]
    %s393 = sld [smem:[#allocation2 + $0x1]]
    %v394 = vstv %s393
    %v395 = vmul.f32 %v394, %v377
    %v396 = vmul.f32 %v394, %v378
    %v397 = vmul.f32 %v394, %v379
    %v398 = vmul.f32 %v394, %v380
    %v399 = vmul.f32 %v394, %v381
    %v400 = vmul.f32 %v394, %v382
    %v401 = vmul.f32 %v394, %v383
    %v402 = vmul.f32 %v394, %v384
    %v403 = vmul.f32 %v394, %v385
    %v404 = vmul.f32 %v394, %v386
    %v405 = vmul.f32 %v394, %v387
    %v406 = vmul.f32 %v394, %v388
    %v407 = vmul.f32 %v394, %v389
    %v408 = vmul.f32 %v394, %v390
    %v409 = vmul.f32 %v394, %v391
    %v410 = vmul.f32 %v394, %v392
    %v411 = vpack.c.bf16 %v378, %v377
    %v412 = vpack.c.bf16 %v380, %v379
    %v413 = vpack.c.bf16 %v382, %v381
    %v414 = vpack.c.bf16 %v384, %v383
    %v415 = vpack.c.bf16 %v386, %v385
    %v416 = vpack.c.bf16 %v388, %v387
    %v417 = vpack.c.bf16 %v390, %v389
    %v418 = vpack.c.bf16 %v392, %v391
    %v419 = vld [vmem:[#allocation7] sm:$0xf]
    %v420 = vld [vmem:[#allocation7 + $0x4] sm:$0xf]
    %v421 = vld [vmem:[#allocation7 + $0x8] sm:$0xf]
    %v422 = vld [vmem:[#allocation7 + $0xc] sm:$0xf]
    %v423 = vld [vmem:[#allocation7 + $0x10] sm:$0xf]
    %v424 = vld [vmem:[#allocation7 + $0x14] sm:$0xf]
    %v425 = vld [vmem:[#allocation7 + $0x18] sm:$0xf]
    %v426 = vld [vmem:[#allocation7 + $0x1c] sm:$0xf]
    %v427 = vld [vmem:[#allocation7 + $0x20] sm:$0xf]
    %v428 = vld [vmem:[#allocation7 + $0x24] sm:$0xf]
    %v429 = vld [vmem:[#allocation7 + $0x28] sm:$0xf]
    %v430 = vld [vmem:[#allocation7 + $0x2c] sm:$0xf]
    %v431 = vld [vmem:[#allocation7 + $0x30] sm:$0xf]
    %v432 = vld [vmem:[#allocation7 + $0x34] sm:$0xf]
    %v433 = vld [vmem:[#allocation7 + $0x38] sm:$0xf]
    %v434 = vld [vmem:[#allocation7 + $0x3c] sm:$0xf]
    %v451 = vunpack.c.l.b16 %v419
    %v452 = vunpack.c.l.b16 %v420
    %v453 = vunpack.c.l.b16 %v421
    %v454 = vunpack.c.l.b16 %v422
    %v455 = vunpack.c.l.b16 %v423
    %v456 = vunpack.c.l.b16 %v424
    %v457 = vunpack.c.l.b16 %v425
    %v458 = vunpack.c.l.b16 %v426
    %v459 = vunpack.c.l.b16 %v427
    %v460 = vunpack.c.l.b16 %v428
    %v461 = vunpack.c.l.b16 %v429
    %v462 = vunpack.c.l.b16 %v430
    %v463 = vunpack.c.l.b16 %v431
    %v464 = vunpack.c.l.b16 %v432
    %v465 = vunpack.c.l.b16 %v433
    %v466 = vunpack.c.l.b16 %v434
    %v467 = vpack.c.b16 %v452, %v451
    %v468 = vpack.c.b16 %v454, %v453
    %v469 = vpack.c.b16 %v456, %v455
    %v470 = vpack.c.b16 %v458, %v457
    %v471 = vpack.c.b16 %v460, %v459
    %v472 = vpack.c.b16 %v462, %v461
    %v473 = vpack.c.b16 %v464, %v463
    %v474 = vpack.c.b16 %v466, %v465
    %483 = vmatprep.subr.bf16.mxu0 0
    %484 = vmatpush1.bf16.msra.mxu0 %v474
    %485 = vmatprep.subr.bf16.mxu0 0
    %486 = vmatpush1.bf16.msra.mxu0 %v473
    %487 = vmatprep.subr.bf16.mxu0 0
    %488 = vmatpush1.bf16.msra.mxu0 %v472
    %489 = vmatprep.subr.bf16.mxu0 0
    %490 = vmatpush1.bf16.msra.mxu0 %v471
    %491 = vmatprep.subr.bf16.mxu0 0
    %492 = vmatpush1.bf16.msra.mxu0 %v470
    %493 = vmatprep.subr.bf16.mxu0 0
    %494 = vmatpush1.bf16.msra.mxu0 %v469
    %495 = vmatprep.subr.bf16.mxu0 0
    %496 = vmatpush1.bf16.msra.mxu0 %v468
    %497 = vmatprep.subr.bf16.mxu0 0
    %498 = vmatpush1.bf16.msra.mxu0 %v467
    %499 = vmatprep.subr.bf16.mxu0 0
    %500 = vmatpush2.bf16.msra.mxu0 0
    %501 = vmatprep.subr.bf16.mxu0 0
    %502 = vmatpush2.bf16.msra.mxu0 0
    %503 = vmatprep.subr.bf16.mxu0 0
    %504 = vmatpush2.bf16.msra.mxu0 0
    %505 = vmatprep.subr.bf16.mxu0 0
    %506 = vmatpush2.bf16.msra.mxu0 0
    %507 = vmatprep.subr.bf16.mxu0 0
    %508 = vmatpush2.bf16.msra.mxu0 0
    %509 = vmatprep.subr.bf16.mxu0 0
    %510 = vmatpush2.bf16.msra.mxu0 0
    %511 = vmatprep.subr.bf16.mxu0 0
    %512 = vmatpush2.bf16.msra.mxu0 0
    %513 = vmatprep.subr.bf16.mxu0 0
    %514 = vmatpush2.bf16.msra.mxu0 0
    %515 = vmatprep.mubr.bf16.mxu0 0
    %516 = vmatmul.mubr.bf16.gmra.mxu0 %v411
    %v517 = vpop.f32.mrf.mxu0
    %v518 = vadd.f32 0.0, %v517
    %v519 = vpop.f32.mrf.mxu0
    %v520 = vpop.f32.mrf.mxu0
    %v521 = vadd.f32 0.0, %v520
    %v522 = vpop.f32.mrf.mxu0
    %523 = vmatprep.mubr.bf16.mxu0 0
    %524 = vmatmul.mubr.bf16.gmra.mxu0 %v412
    %v525 = vpop.f32.mrf.mxu0
    %v526 = vadd.f32 0.0, %v525
    %v527 = vpop.f32.mrf.mxu0
    %v528 = vpop.f32.mrf.mxu0
    %v529 = vadd.f32 0.0, %v528
    %v530 = vpop.f32.mrf.mxu0
    %531 = vmatprep.mubr.bf16.mxu0 0
    %532 = vmatmul.mubr.bf16.gmra.mxu0 %v413
    %v533 = vpop.f32.mrf.mxu0
    %v534 = vadd.f32 0.0, %v533
    %v535 = vpop.f32.mrf.mxu0
    %v536 = vpop.f32.mrf.mxu0
    %v537 = vadd.f32 0.0, %v536
    %v538 = vpop.f32.mrf.mxu0
    %539 = vmatprep.mubr.bf16.mxu0 0
    %540 = vmatmul.mubr.bf16.gmra.mxu0 %v414
    %v541 = vpop.f32.mrf.mxu0
    %v542 = vadd.f32 0.0, %v541
    %v543 = vpop.f32.mrf.mxu0
    %v544 = vpop.f32.mrf.mxu0
    %v545 = vadd.f32 0.0, %v544
    %v546 = vpop.f32.mrf.mxu0
    %547 = vmatprep.mubr.bf16.mxu0 0
    %548 = vmatmul.mubr.bf16.gmra.mxu0 %v415
    %v549 = vpop.f32.mrf.mxu0
    %v550 = vadd.f32 0.0, %v549
    %v551 = vpop.f32.mrf.mxu0
    %v552 = vpop.f32.mrf.mxu0
    %v553 = vadd.f32 0.0, %v552
    %v554 = vpop.f32.mrf.mxu0
    %555 = vmatprep.mubr.bf16.mxu0 0
    %556 = vmatmul.mubr.bf16.gmra.mxu0 %v416
    %v557 = vpop.f32.mrf.mxu0
    %v558 = vadd.f32 0.0, %v557
    %v559 = vpop.f32.mrf.mxu0
    %v560 = vpop.f32.mrf.mxu0
    %v561 = vadd.f32 0.0, %v560
    %v562 = vpop.f32.mrf.mxu0
    %563 = vmatprep.mubr.bf16.mxu0 0
    %564 = vmatmul.mubr.bf16.gmra.mxu0 %v417
    %v565 = vpop.f32.mrf.mxu0
    %v566 = vadd.f32 0.0, %v565
    %v567 = vpop.f32.mrf.mxu0
    %v568 = vpop.f32.mrf.mxu0
    %v569 = vadd.f32 0.0, %v568
    %v570 = vpop.f32.mrf.mxu0
    %571 = vmatprep.mubr.bf16.mxu0 0
    %572 = vmatmul.mubr.bf16.gmra.mxu0 %v418
    %v573 = vpop.f32.mrf.mxu0
    %v574 = vadd.f32 0.0, %v573
    %v575 = vpop.f32.mrf.mxu0
    %v576 = vpop.f32.mrf.mxu0
    %v577 = vadd.f32 0.0, %v576
    %v578 = vpop.f32.mrf.mxu0
    %579 = vdwg.mxu0
    %s580 = sld [smem:[#allocation2 + $0x2]]
    %v581 = vstv %s580
    %v582 = vmul.f32 %v581, %v518
    %v583 = vmul.f32 %v581, %v521
    %v584 = vmul.f32 %v581, %v526
    %v585 = vmul.f32 %v581, %v529
    %v586 = vmul.f32 %v581, %v534
    %v587 = vmul.f32 %v581, %v537
    %v588 = vmul.f32 %v581, %v542
    %v589 = vmul.f32 %v581, %v545
    %v590 = vmul.f32 %v581, %v550
    %v591 = vmul.f32 %v581, %v553
    %v592 = vmul.f32 %v581, %v558
    %v593 = vmul.f32 %v581, %v561
    %v594 = vmul.f32 %v581, %v566
    %v595 = vmul.f32 %v581, %v569
    %v596 = vmul.f32 %v581, %v574
    %v597 = vmul.f32 %v581, %v577
    %v598 = vadd.f32 %v395, %v582
    %v599 = vadd.f32 %v396, %v583
    %v600 = vadd.f32 %v397, %v584
    %v601 = vadd.f32 %v398, %v585
    %v602 = vadd.f32 %v399, %v586
    %v603 = vadd.f32 %v400, %v587
    %v604 = vadd.f32 %v401, %v588
    %v605 = vadd.f32 %v402, %v589
    %v606 = vadd.f32 %v403, %v590
    %v607 = vadd.f32 %v404, %v591
    %v608 = vadd.f32 %v405, %v592
    %v609 = vadd.f32 %v406, %v593
    %v610 = vadd.f32 %v407, %v594
    %v611 = vadd.f32 %v408, %v595
    %v612 = vadd.f32 %v409, %v596
    %v613 = vadd.f32 %v410, %v597
    %v614 = vld [vmem:[#allocation9] sm:$0xff]
    %v615 = vld [vmem:[#allocation9 + $0x8] sm:$0xff]
    %v616 = vld [vmem:[#allocation9 + $0x10] sm:$0xff]
    %v617 = vld [vmem:[#allocation9 + $0x18] sm:$0xff]
    %v618 = vld [vmem:[#allocation9 + $0x20] sm:$0xff]
    %v619 = vld [vmem:[#allocation9 + $0x28] sm:$0xff]
    %v620 = vld [vmem:[#allocation9 + $0x30] sm:$0xff]
    %v621 = vld [vmem:[#allocation9 + $0x38] sm:$0xff]
    %v622 = vld [vmem:[#allocation9 + $0x40] sm:$0xff]
    %v623 = vld [vmem:[#allocation9 + $0x48] sm:$0xff]
    %v624 = vld [vmem:[#allocation9 + $0x50] sm:$0xff]
    %v625 = vld [vmem:[#allocation9 + $0x58] sm:$0xff]
    %v626 = vld [vmem:[#allocation9 + $0x60] sm:$0xff]
    %v627 = vld [vmem:[#allocation9 + $0x68] sm:$0xff]
    %v628 = vld [vmem:[#allocation9 + $0x70] sm:$0xff]
    %v629 = vld [vmem:[#allocation9 + $0x78] sm:$0xff]
    %v630 = vadd.f32 %v299, %v614
    %v631 = vadd.f32 %v303, %v615
    %v632 = vadd.f32 %v309, %v616
    %v633 = vadd.f32 %v313, %v617
    %v634 = vadd.f32 %v319, %v618
    %v635 = vadd.f32 %v323, %v619
    %v636 = vadd.f32 %v329, %v620
    %v637 = vadd.f32 %v333, %v621
    %v638 = vadd.f32 %v339, %v622
    %v639 = vadd.f32 %v343, %v623
    %v640 = vadd.f32 %v349, %v624
    %v641 = vadd.f32 %v353, %v625
    %v642 = vadd.f32 %v359, %v626
    %v643 = vadd.f32 %v363, %v627
    %v644 = vadd.f32 %v369, %v628
    %v645 = vadd.f32 %v373, %v629
    %s646 = sld [smem:[#allocation2 + $0x3]]
    %v647 = vstv %s646
    %v648 = vmul.f32 %v647, %v630
    %v649 = vmul.f32 %v647, %v631
    %v650 = vmul.f32 %v647, %v632
    %v651 = vmul.f32 %v647, %v633
    %v652 = vmul.f32 %v647, %v634
    %v653 = vmul.f32 %v647, %v635
    %v654 = vmul.f32 %v647, %v636
    %v655 = vmul.f32 %v647, %v637
    %v656 = vmul.f32 %v647, %v638
    %v657 = vmul.f32 %v647, %v639
    %v658 = vmul.f32 %v647, %v640
    %v659 = vmul.f32 %v647, %v641
    %v660 = vmul.f32 %v647, %v642
    %v661 = vmul.f32 %v647, %v643
    %v662 = vmul.f32 %v647, %v644
    %v663 = vmul.f32 %v647, %v645
    %v664 = vadd.f32 %v598, %v648
    %v665 = vadd.f32 %v599, %v649
    %v666 = vadd.f32 %v600, %v650
    %v667 = vadd.f32 %v601, %v651
    %v668 = vadd.f32 %v602, %v652
    %v669 = vadd.f32 %v603, %v653
    %v670 = vadd.f32 %v604, %v654
    %v671 = vadd.f32 %v605, %v655
    %v672 = vadd.f32 %v606, %v656
    %v673 = vadd.f32 %v607, %v657
    %v674 = vadd.f32 %v608, %v658
    %v675 = vadd.f32 %v609, %v659
    %v676 = vadd.f32 %v610, %v660
    %v677 = vadd.f32 %v611, %v661
    %v678 = vadd.f32 %v612, %v662
    %v679 = vadd.f32 %v613, %v663
    %680 = vst [vmem:[#allocation13] sm:$0xff] %v664
    %681 = vst [vmem:[#allocation13 + $0x8] sm:$0xff] %v665
    %682 = vst [vmem:[#allocation13 + $0x10] sm:$0xff] %v666
    %683 = vst [vmem:[#allocation13 + $0x18] sm:$0xff] %v667
    %684 = vst [vmem:[#allocation13 + $0x20] sm:$0xff] %v668
    %685 = vst [vmem:[#allocation13 + $0x28] sm:$0xff] %v669
    %686 = vst [vmem:[#allocation13 + $0x30] sm:$0xff] %v670
    %687 = vst [vmem:[#allocation13 + $0x38] sm:$0xff] %v671
    %688 = vst [vmem:[#allocation13 + $0x40] sm:$0xff] %v672
    %689 = vst [vmem:[#allocation13 + $0x48] sm:$0xff] %v673
    %690 = vst [vmem:[#allocation13 + $0x50] sm:$0xff] %v674
    %691 = vst [vmem:[#allocation13 + $0x58] sm:$0xff] %v675
    %692 = vst [vmem:[#allocation13 + $0x60] sm:$0xff] %v676
    %693 = vst [vmem:[#allocation13 + $0x68] sm:$0xff] %v677
    %694 = vst [vmem:[#allocation13 + $0x70] sm:$0xff] %v678
    %695 = vst [vmem:[#allocation13 + $0x78] sm:$0xff] %v679
    %s696 = scalar_lea.vmem [#allocation6], 128
    %v697 = vld [vmem:[%s696] sm:$0xff]
    %v698 = vld [vmem:[%s696 + $0x8] sm:$0xff]
    %v699 = vld [vmem:[%s696 + $0x10] sm:$0xff]
    %v700 = vld [vmem:[%s696 + $0x18] sm:$0xff]
    %v701 = vld [vmem:[%s696 + $0x20] sm:$0xff]
    %v702 = vld [vmem:[%s696 + $0x28] sm:$0xff]
    %v703 = vld [vmem:[%s696 + $0x30] sm:$0xff]
    %v704 = vld [vmem:[%s696 + $0x38] sm:$0xff]
    %v705 = vld [vmem:[%s696 + $0x40] sm:$0xff]
    %v706 = vld [vmem:[%s696 + $0x48] sm:$0xff]
    %v707 = vld [vmem:[%s696 + $0x50] sm:$0xff]
    %v708 = vld [vmem:[%s696 + $0x58] sm:$0xff]
    %v709 = vld [vmem:[%s696 + $0x60] sm:$0xff]
    %v710 = vld [vmem:[%s696 + $0x68] sm:$0xff]
    %v711 = vld [vmem:[%s696 + $0x70] sm:$0xff]
    %v712 = vld [vmem:[%s696 + $0x78] sm:$0xff]
    %s713 = sld [smem:[#allocation2 + $0x1]]
    %v714 = vstv %s713
    %v715 = vmul.f32 %v714, %v697
    %v716 = vmul.f32 %v714, %v698
    %v717 = vmul.f32 %v714, %v699
    %v718 = vmul.f32 %v714, %v700
    %v719 = vmul.f32 %v714, %v701
    %v720 = vmul.f32 %v714, %v702
    %v721 = vmul.f32 %v714, %v703
    %v722 = vmul.f32 %v714, %v704
    %v723 = vmul.f32 %v714, %v705
    %v724 = vmul.f32 %v714, %v706
    %v725 = vmul.f32 %v714, %v707
    %v726 = vmul.f32 %v714, %v708
    %v727 = vmul.f32 %v714, %v709
    %v728 = vmul.f32 %v714, %v710
    %v729 = vmul.f32 %v714, %v711
    %v730 = vmul.f32 %v714, %v712
    %v731 = vpack.c.bf16 %v698, %v697
    %v732 = vpack.c.bf16 %v700, %v699
    %v733 = vpack.c.bf16 %v702, %v701
    %v734 = vpack.c.bf16 %v704, %v703
    %v735 = vpack.c.bf16 %v706, %v705
    %v736 = vpack.c.bf16 %v708, %v707
    %v737 = vpack.c.bf16 %v710, %v709
    %v738 = vpack.c.bf16 %v712, %v711
    %v739 = vld [vmem:[#allocation7] sm:$0xf]
    %v740 = vld [vmem:[#allocation7 + $0x4] sm:$0xf]
    %v741 = vld [vmem:[#allocation7 + $0x8] sm:$0xf]
    %v742 = vld [vmem:[#allocation7 + $0xc] sm:$0xf]
    %v743 = vld [vmem:[#allocation7 + $0x10] sm:$0xf]
    %v744 = vld [vmem:[#allocation7 + $0x14] sm:$0xf]
    %v745 = vld [vmem:[#allocation7 + $0x18] sm:$0xf]
    %v746 = vld [vmem:[#allocation7 + $0x1c] sm:$0xf]
    %v747 = vld [vmem:[#allocation7 + $0x20] sm:$0xf]
    %v748 = vld [vmem:[#allocation7 + $0x24] sm:$0xf]
    %v749 = vld [vmem:[#allocation7 + $0x28] sm:$0xf]
    %v750 = vld [vmem:[#allocation7 + $0x2c] sm:$0xf]
    %v751 = vld [vmem:[#allocation7 + $0x30] sm:$0xf]
    %v752 = vld [vmem:[#allocation7 + $0x34] sm:$0xf]
    %v753 = vld [vmem:[#allocation7 + $0x38] sm:$0xf]
    %v754 = vld [vmem:[#allocation7 + $0x3c] sm:$0xf]
    %v771 = vunpack.c.l.b16 %v739
    %v772 = vunpack.c.l.b16 %v740
    %v773 = vunpack.c.l.b16 %v741
    %v774 = vunpack.c.l.b16 %v742
    %v775 = vunpack.c.l.b16 %v743
    %v776 = vunpack.c.l.b16 %v744
    %v777 = vunpack.c.l.b16 %v745
    %v778 = vunpack.c.l.b16 %v746
    %v779 = vunpack.c.l.b16 %v747
    %v780 = vunpack.c.l.b16 %v748
    %v781 = vunpack.c.l.b16 %v749
    %v782 = vunpack.c.l.b16 %v750
    %v783 = vunpack.c.l.b16 %v751
    %v784 = vunpack.c.l.b16 %v752
    %v785 = vunpack.c.l.b16 %v753
    %v786 = vunpack.c.l.b16 %v754
    %v787 = vpack.c.b16 %v772, %v771
    %v788 = vpack.c.b16 %v774, %v773
    %v789 = vpack.c.b16 %v776, %v775
    %v790 = vpack.c.b16 %v778, %v777
    %v791 = vpack.c.b16 %v780, %v779
    %v792 = vpack.c.b16 %v782, %v781
    %v793 = vpack.c.b16 %v784, %v783
    %v794 = vpack.c.b16 %v786, %v785
    %803 = vmatprep.subr.bf16.mxu0 0
    %804 = vmatpush1.bf16.msra.mxu0 %v794
    %805 = vmatprep.subr.bf16.mxu0 0
    %806 = vmatpush1.bf16.msra.mxu0 %v793
    %807 = vmatprep.subr.bf16.mxu0 0
    %808 = vmatpush1.bf16.msra.mxu0 %v792
    %809 = vmatprep.subr.bf16.mxu0 0
    %810 = vmatpush1.bf16.msra.mxu0 %v791
    %811 = vmatprep.subr.bf16.mxu0 0
    %812 = vmatpush1.bf16.msra.mxu0 %v790
    %813 = vmatprep.subr.bf16.mxu0 0
    %814 = vmatpush1.bf16.msra.mxu0 %v789
    %815 = vmatprep.subr.bf16.mxu0 0
    %816 = vmatpush1.bf16.msra.mxu0 %v788
    %817 = vmatprep.subr.bf16.mxu0 0
    %818 = vmatpush1.bf16.msra.mxu0 %v787
    %819 = vmatprep.subr.bf16.mxu0 0
    %820 = vmatpush2.bf16.msra.mxu0 0
    %821 = vmatprep.subr.bf16.mxu0 0
    %822 = vmatpush2.bf16.msra.mxu0 0
    %823 = vmatprep.subr.bf16.mxu0 0
    %824 = vmatpush2.bf16.msra.mxu0 0
    %825 = vmatprep.subr.bf16.mxu0 0
    %826 = vmatpush2.bf16.msra.mxu0 0
    %827 = vmatprep.subr.bf16.mxu0 0
    %828 = vmatpush2.bf16.msra.mxu0 0
    %829 = vmatprep.subr.bf16.mxu0 0
    %830 = vmatpush2.bf16.msra.mxu0 0
    %831 = vmatprep.subr.bf16.mxu0 0
    %832 = vmatpush2.bf16.msra.mxu0 0
    %833 = vmatprep.subr.bf16.mxu0 0
    %834 = vmatpush2.bf16.msra.mxu0 0
    %835 = vmatprep.mubr.bf16.mxu0 0
    %836 = vmatmul.mubr.bf16.gmra.mxu0 %v731
    %v837 = vpop.f32.mrf.mxu0
    %v838 = vadd.f32 0.0, %v837
    %v839 = vpop.f32.mrf.mxu0
    %v840 = vpop.f32.mrf.mxu0
    %v841 = vadd.f32 0.0, %v840
    %v842 = vpop.f32.mrf.mxu0
    %843 = vmatprep.mubr.bf16.mxu0 0
    %844 = vmatmul.mubr.bf16.gmra.mxu0 %v732
    %v845 = vpop.f32.mrf.mxu0
    %v846 = vadd.f32 0.0, %v845
    %v847 = vpop.f32.mrf.mxu0
    %v848 = vpop.f32.mrf.mxu0
    %v849 = vadd.f32 0.0, %v848
    %v850 = vpop.f32.mrf.mxu0
    %851 = vmatprep.mubr.bf16.mxu0 0
    %852 = vmatmul.mubr.bf16.gmra.mxu0 %v733
    %v853 = vpop.f32.mrf.mxu0
    %v854 = vadd.f32 0.0, %v853
    %v855 = vpop.f32.mrf.mxu0
    %v856 = vpop.f32.mrf.mxu0
    %v857 = vadd.f32 0.0, %v856
    %v858 = vpop.f32.mrf.mxu0
    %859 = vmatprep.mubr.bf16.mxu0 0
    %860 = vmatmul.mubr.bf16.gmra.mxu0 %v734
    %v861 = vpop.f32.mrf.mxu0
    %v862 = vadd.f32 0.0, %v861
    %v863 = vpop.f32.mrf.mxu0
    %v864 = vpop.f32.mrf.mxu0
    %v865 = vadd.f32 0.0, %v864
    %v866 = vpop.f32.mrf.mxu0
    %867 = vmatprep.mubr.bf16.mxu0 0
    %868 = vmatmul.mubr.bf16.gmra.mxu0 %v735
    %v869 = vpop.f32.mrf.mxu0
    %v870 = vadd.f32 0.0, %v869
    %v871 = vpop.f32.mrf.mxu0
    %v872 = vpop.f32.mrf.mxu0
    %v873 = vadd.f32 0.0, %v872
    %v874 = vpop.f32.mrf.mxu0
    %875 = vmatprep.mubr.bf16.mxu0 0
    %876 = vmatmul.mubr.bf16.gmra.mxu0 %v736
    %v877 = vpop.f32.mrf.mxu0
    %v878 = vadd.f32 0.0, %v877
    %v879 = vpop.f32.mrf.mxu0
    %v880 = vpop.f32.mrf.mxu0
    %v881 = vadd.f32 0.0, %v880
    %v882 = vpop.f32.mrf.mxu0
    %883 = vmatprep.mubr.bf16.mxu0 0
    %884 = vmatmul.mubr.bf16.gmra.mxu0 %v737
    %v885 = vpop.f32.mrf.mxu0
    %v886 = vadd.f32 0.0, %v885
    %v887 = vpop.f32.mrf.mxu0
    %v888 = vpop.f32.mrf.mxu0
    %v889 = vadd.f32 0.0, %v888
    %v890 = vpop.f32.mrf.mxu0
    %891 = vmatprep.mubr.bf16.mxu0 0
    %892 = vmatmul.mubr.bf16.gmra.mxu0 %v738
    %v893 = vpop.f32.mrf.mxu0
    %v894 = vadd.f32 0.0, %v893
    %v895 = vpop.f32.mrf.mxu0
    %v896 = vpop.f32.mrf.mxu0
    %v897 = vadd.f32 0.0, %v896
    %v898 = vpop.f32.mrf.mxu0
    %899 = vdwg.mxu0
    %s900 = sld [smem:[#allocation2 + $0x2]]
    %v901 = vstv %s900
    %v902 = vmul.f32 %v901, %v838
    %v903 = vmul.f32 %v901, %v841
    %v904 = vmul.f32 %v901, %v846
    %v905 = vmul.f32 %v901, %v849
    %v906 = vmul.f32 %v901, %v854
    %v907 = vmul.f32 %v901, %v857
    %v908 = vmul.f32 %v901, %v862
    %v909 = vmul.f32 %v901, %v865
    %v910 = vmul.f32 %v901, %v870
    %v911 = vmul.f32 %v901, %v873
    %v912 = vmul.f32 %v901, %v878
    %v913 = vmul.f32 %v901, %v881
    %v914 = vmul.f32 %v901, %v886
    %v915 = vmul.f32 %v901, %v889
    %v916 = vmul.f32 %v901, %v894
    %v917 = vmul.f32 %v901, %v897
    %v918 = vadd.f32 %v715, %v902
    %v919 = vadd.f32 %v716, %v903
    %v920 = vadd.f32 %v717, %v904
    %v921 = vadd.f32 %v718, %v905
    %v922 = vadd.f32 %v719, %v906
    %v923 = vadd.f32 %v720, %v907
    %v924 = vadd.f32 %v721, %v908
    %v925 = vadd.f32 %v722, %v909
    %v926 = vadd.f32 %v723, %v910
    %v927 = vadd.f32 %v724, %v911
    %v928 = vadd.f32 %v725, %v912
    %v929 = vadd.f32 %v726, %v913
    %v930 = vadd.f32 %v727, %v914
    %v931 = vadd.f32 %v728, %v915
    %v932 = vadd.f32 %v729, %v916
    %v933 = vadd.f32 %v730, %v917
    %s934 = scalar_lea.vmem [#allocation9], 128
    %v935 = vld [vmem:[%s934] sm:$0xff]
    %v936 = vld [vmem:[%s934 + $0x8] sm:$0xff]
    %v937 = vld [vmem:[%s934 + $0x10] sm:$0xff]
    %v938 = vld [vmem:[%s934 + $0x18] sm:$0xff]
    %v939 = vld [vmem:[%s934 + $0x20] sm:$0xff]
    %v940 = vld [vmem:[%s934 + $0x28] sm:$0xff]
    %v941 = vld [vmem:[%s934 + $0x30] sm:$0xff]
    %v942 = vld [vmem:[%s934 + $0x38] sm:$0xff]
    %v943 = vld [vmem:[%s934 + $0x40] sm:$0xff]
    %v944 = vld [vmem:[%s934 + $0x48] sm:$0xff]
    %v945 = vld [vmem:[%s934 + $0x50] sm:$0xff]
    %v946 = vld [vmem:[%s934 + $0x58] sm:$0xff]
    %v947 = vld [vmem:[%s934 + $0x60] sm:$0xff]
    %v948 = vld [vmem:[%s934 + $0x68] sm:$0xff]
    %v949 = vld [vmem:[%s934 + $0x70] sm:$0xff]
    %v950 = vld [vmem:[%s934 + $0x78] sm:$0xff]
    %v951 = vadd.f32 %v301, %v935
    %v952 = vadd.f32 %v305, %v936
    %v953 = vadd.f32 %v311, %v937
    %v954 = vadd.f32 %v315, %v938
    %v955 = vadd.f32 %v321, %v939
    %v956 = vadd.f32 %v325, %v940
    %v957 = vadd.f32 %v331, %v941
    %v958 = vadd.f32 %v335, %v942
    %v959 = vadd.f32 %v341, %v943
    %v960 = vadd.f32 %v345, %v944
    %v961 = vadd.f32 %v351, %v945
    %v962 = vadd.f32 %v355, %v946
    %v963 = vadd.f32 %v361, %v947
    %v964 = vadd.f32 %v365, %v948
    %v965 = vadd.f32 %v371, %v949
    %v966 = vadd.f32 %v375, %v950
    %s967 = sld [smem:[#allocation2 + $0x3]]
    %v968 = vstv %s967
    %v969 = vmul.f32 %v968, %v951
    %v970 = vmul.f32 %v968, %v952
    %v971 = vmul.f32 %v968, %v953
    %v972 = vmul.f32 %v968, %v954
    %v973 = vmul.f32 %v968, %v955
    %v974 = vmul.f32 %v968, %v956
    %v975 = vmul.f32 %v968, %v957
    %v976 = vmul.f32 %v968, %v958
    %v977 = vmul.f32 %v968, %v959
    %v978 = vmul.f32 %v968, %v960
    %v979 = vmul.f32 %v968, %v961
    %v980 = vmul.f32 %v968, %v962
    %v981 = vmul.f32 %v968, %v963
    %v982 = vmul.f32 %v968, %v964
    %v983 = vmul.f32 %v968, %v965
    %v984 = vmul.f32 %v968, %v966
    %v985 = vadd.f32 %v918, %v969
    %v986 = vadd.f32 %v919, %v970
    %v987 = vadd.f32 %v920, %v971
    %v988 = vadd.f32 %v921, %v972
    %v989 = vadd.f32 %v922, %v973
    %v990 = vadd.f32 %v923, %v974
    %v991 = vadd.f32 %v924, %v975
    %v992 = vadd.f32 %v925, %v976
    %v993 = vadd.f32 %v926, %v977
    %v994 = vadd.f32 %v927, %v978
    %v995 = vadd.f32 %v928, %v979
    %v996 = vadd.f32 %v929, %v980
    %v997 = vadd.f32 %v930, %v981
    %v998 = vadd.f32 %v931, %v982
    %v999 = vadd.f32 %v932, %v983
    %v1000 = vadd.f32 %v933, %v984
    %s1001 = scalar_lea.vmem [#allocation13], 128
    %1002 = vst [vmem:[%s1001] sm:$0xff] %v985
    %1003 = vst [vmem:[%s1001 + $0x8] sm:$0xff] %v986
    %1004 = vst [vmem:[%s1001 + $0x10] sm:$0xff] %v987
    %1005 = vst [vmem:[%s1001 + $0x18] sm:$0xff] %v988
    %1006 = vst [vmem:[%s1001 + $0x20] sm:$0xff] %v989
    %1007 = vst [vmem:[%s1001 + $0x28] sm:$0xff] %v990
    %1008 = vst [vmem:[%s1001 + $0x30] sm:$0xff] %v991
    %1009 = vst [vmem:[%s1001 + $0x38] sm:$0xff] %v992
    %1010 = vst [vmem:[%s1001 + $0x40] sm:$0xff] %v993
    %1011 = vst [vmem:[%s1001 + $0x48] sm:$0xff] %v994
    %1012 = vst [vmem:[%s1001 + $0x50] sm:$0xff] %v995
    %1013 = vst [vmem:[%s1001 + $0x58] sm:$0xff] %v996
    %1014 = vst [vmem:[%s1001 + $0x60] sm:$0xff] %v997
    %1015 = vst [vmem:[%s1001 + $0x68] sm:$0xff] %v998
    %1016 = vst [vmem:[%s1001 + $0x70] sm:$0xff] %v999
    %1017 = vst [vmem:[%s1001 + $0x78] sm:$0xff] %v1000
    // Predicated region
    $region50: #{tpu_custom_call.1} parent=1 // pred_check
      _
    $region51: #{tpu_custom_call.1} parent=1 // pred_check_branch
      %1019 = sbr.rel (0) target = $region53
    $region52: #{tpu_custom_call.1} parent=1 // pred_region
      %s1021 = ssub.s32 4096, 4096
      %1022 = vsyncadd [#allocation4], %s1021
      %s1023 = sshll.u32 [#allocation13], 4
      %s1024 = int_to_ptr.vmem [resolvable:$true] %s1023
      %1029 = dma.vmem_to_hbm [thread:$0]  %s1024, 4096, %s6, [#allocation4], 128, 128, 8
    $region53: #{tpu_custom_call.1} parent=1 // pred_fallthru
      _
    // Predicated region
    $region54: #{tpu_custom_call.1} parent=1 // pred_check
      _
    $region55: #{tpu_custom_call.1} parent=1 // pred_check_branch
      %1031 = sbr.rel (0) target = $region57
    $region56: #{tpu_custom_call.1} parent=1 // pred_region
      %1032 = dma.done [#allocation4], 4096
    $region57: #{tpu_custom_call.1} parent=1 // pred_fallthru
      _
    %1033 = vsyncpa [#allocation3], 1
    %1034 = vsyncpa [#allocation8], 1
    %1035 = vsyncpa [#allocation11], 1
    %1036 = vsyncpa [#allocation4], 1
    %1037 = vsyncpa [#allocation5], 1

</llo_original>
